<compile_context>
chip_gen: v7x
topology: tpu7x:2x2x1
jax: 0.10.0
libtpu: 0.0.40
codegen_flags: <defaults>
</compile_context>

<pallas_src>
import jax
import jax.numpy as jnp
from jax.experimental import pallas as pl
from jax.experimental.pallas import tpu as pltpu


NEG_SLOPE = 0.01          # PyTorch F.leaky_relu default
D_IN, D_H, D_OUT = 4, 20, 2
SUB = 4                   # batch sub-tiles packed along the sublane axis
PACK_IN_ROWS = SUB * D_IN   # 16 -> exactly fills a bf16 (16,128) tile
PACK_OUT_ROWS = SUB * D_OUT  # 8 -> exactly fills an f32 (8,128) tile


def bugnn_kernel(x_ref, w_ref, b_ref, o_ref):
    """x_ref: (16, TBc) bf16 -- 4 packed batch sub-tiles of (4, TBc)
       w_ref: (20, 384) bf16 -- w1 @ cols 0:4, w2 @ 128:148, w3 @ rows 0:2, 256:276
       b_ref: (56, 1)   f32  -- b1 @ rows 0:20, b2 @ 24:44, b3 @ 48:50
       o_ref: (8, TBc)  f32  -- 4 packed batch sub-tiles of (2, TBc)"""
    # Weight / bias slices (static, aligned starts) -- hoisted out of the loop.
    w1 = w_ref[:, 0:4]            # (20, 4)  bf16
    w2 = w_ref[:, 128:148]        # (20, 20) bf16
    w3 = w_ref[0:2, 256:276]      # (2, 20)  bf16
    b1 = b_ref[0:20, :]           # (20, 1)  f32
    b2 = b_ref[24:44, :]          # (20, 1)  f32
    b3 = b_ref[48:50, :]          # (2, 1)   f32

    x = x_ref[...]                # (16, TBc) bf16, one dense load
    outs = []
    for g in range(SUB):          # unrolled at trace time
        xg = x[g * D_IN:(g + 1) * D_IN, :]                        # (4, TBc) bf16
        # fc1 + leaky_relu (bf16 x bf16 MXU, f32 accumulate)
        h1 = jnp.dot(w1, xg, preferred_element_type=jnp.float32) + b1
        h1 = jnp.where(h1 > 0, h1, NEG_SLOPE * h1).astype(jnp.bfloat16)
        # dropout(p=0.05): identity in eval/inference mode.
        # TODO(synk): training-mode dropout (Bernoulli mask + 1/(1-p) scale).
        # fc2 + leaky_relu
        h2 = jnp.dot(w2, h1, preferred_element_type=jnp.float32) + b2
        h2 = jnp.where(h2 > 0, h2, NEG_SLOPE * h2).astype(jnp.bfloat16)
        # fc3 + tanh
        h3 = jnp.dot(w3, h2, preferred_element_type=jnp.float32) + b3
        outs.append(jnp.tanh(h3))                                  # (2, TBc) f32
    # Single dense, unmasked (8, TBc) store.
    o_ref[...] = jnp.concatenate(outs, axis=0)


def _round_up(n, m):
    return (n + m - 1) // m * m


def pack_params(params):
    """Six small tensors -> two resident operands (bf16 weight slab, f32 bias slab)."""
    w1, b1, w2, b2, w3, b3 = params   # weights [out, in] f32, biases [out] f32
    wts = jnp.zeros((D_H, 3 * 128), jnp.bfloat16)
    wts = wts.at[:, 0:4].set(w1.astype(jnp.bfloat16))
    wts = wts.at[:, 128:148].set(w2.astype(jnp.bfloat16))
    wts = wts.at[0:2, 256:276].set(w3.astype(jnp.bfloat16))
    bias = jnp.zeros((56, 1), jnp.float32)
    bias = bias.at[0:20, 0].set(b1)
    bias = bias.at[24:44, 0].set(b2)
    bias = bias.at[48:50, 0].set(b3)
    return wts, bias


def pack_inputs(x, batch_p):
    """[batch, 4] -> (16, batch_p // 4) bf16: batch on lanes, the 4 contiguous
    batch quarters stacked along the sublane axis (tile-dense in HBM)."""
    batch = x.shape[0]
    cols = batch_p // SUB
    xt = jnp.zeros((D_IN, batch_p), jnp.bfloat16)
    xt = xt.at[:, :batch].set(x.T.astype(jnp.bfloat16))
    return xt.reshape(D_IN, SUB, cols).transpose(1, 0, 2).reshape(PACK_IN_ROWS, cols)


def unpack_outputs(out_p, batch, batch_p):
    """(8, batch_p // 4) f32 -> [batch, 2] f32 (inverse of pack_inputs layout)."""
    cols = batch_p // SUB
    out_t = out_p.reshape(SUB, D_OUT, cols).transpose(1, 0, 2).reshape(D_OUT, batch_p)
    return out_t[:, :batch].T


def bugnn_forward(x, params, *, tb=8192):
    """x: [batch, 4] float. Returns [batch, 2] float32.

    tb = batch elements per grid step (multiple of 512 = 4 sub-tiles x 128
    lanes). Default 8192; sweep 8192..16384 on real workloads (cap ~16384 on
    v5e or raise vmem_limit_bytes)."""
    batch, _ = x.shape
    min_tb = SUB * 128

    tb = max(min_tb, _round_up(min(tb, batch), min_tb))
    batch_p = _round_up(batch, tb)
    # Keep >= 2 grid steps when the batch allows it, so the "parallel" batch
    # axis actually shards across v7x's two TensorCores.
    if batch_p // tb < 2 and tb > min_tb:
        tb = _round_up(tb // 2, min_tb)
        batch_p = _round_up(batch, tb)

    cols = batch_p // SUB          # total packed columns
    tbc = tb // SUB                # packed columns per grid step
    grid = (cols // tbc,)

    wts, bias = pack_params(params)
    xp = pack_inputs(x, batch_p)
    # TODO(synk): in production, have the producer emit x in this packed
    # layout (or fuse pack/unpack into neighbouring ops) to avoid the extra
    # HBM round-trip outside the kernel.

    out_p = pl.pallas_call(
        bugnn_kernel,
        out_shape=jax.ShapeDtypeStruct((PACK_OUT_ROWS, cols), jnp.float32),
        grid=grid,
        in_specs=[
            pl.BlockSpec((PACK_IN_ROWS, tbc), lambda i: (0, i)),  # packed x tile
            pl.BlockSpec(wts.shape, lambda i: (0, 0)),            # resident weights
            pl.BlockSpec(bias.shape, lambda i: (0, 0)),           # resident biases
        ],
        out_specs=pl.BlockSpec((PACK_OUT_ROWS, tbc), lambda i: (0, i)),
        compiler_params=pltpu.CompilerParams(
            dimension_semantics=("parallel",),
        ),
    )(xp, wts, bias)

    return unpack_outputs(out_p, batch, batch_p)


def bugnn_reference(x, params):
    """Pure-JAX f32 reference matching the PyTorch forward (eval mode)."""
    w1, b1, w2, b2, w3, b3 = params
    lrelu = lambda h: jnp.where(h > 0, h, NEG_SLOPE * h)
    h = lrelu(x @ w1.T + b1)
    h = lrelu(h @ w2.T + b2)      # dropout(p=0.05) is identity in eval mode
    return jnp.tanh(h @ w3.T + b3)


def init_params(key):
    """kaiming_normal_ on weights (fan_in mode, std=sqrt(2/fan_in)); default
    Linear bias init U(-1/sqrt(fan_in), 1/sqrt(fan_in)). Weights [out, in]."""
    dims = [(D_IN, D_H), (D_H, D_H), (D_H, D_OUT)]
    params = []
    for fan_in, fan_out in dims:
        key, kw, kb = jax.random.split(key, 3)
        std = (2.0 / fan_in) ** 0.5
        w = jax.random.normal(kw, (fan_out, fan_in), jnp.float32) * std
        bound = 1.0 / (fan_in ** 0.5)
        b = jax.random.uniform(kb, (fan_out,), jnp.float32,
                               minval=-bound, maxval=bound)
        params.extend([w, b])
    return tuple(params)


if __name__ == "__main__":
    key = jax.random.PRNGKey(0)
    kp, kx = jax.random.split(key)
    params = init_params(kp)

    batch = 1000   # not a tile multiple -> exercises padding + unpack
    x = jax.random.normal(kx, (batch, 4), jnp.float32)

    # Default tb clamps to 512 here -> padded batch 1024, 2 grid steps:
    # exercises the packed layout and the pipelined / parallel batch tiling.
    out = bugnn_forward(x, params)
    out = jax.block_until_ready(out)
    assert out.shape == (batch, 2), out.shape

    ref = bugnn_reference(x, params)
    max_err = float(jnp.max(jnp.abs(out - ref)))
    # bf16 inputs / weights / inter-layer activations vs f32 reference.
    assert max_err < 8e-2, f"max abs err {max_err}"

    print("KERNEL_OK")
</pallas_src>

<mosaic_0001>
module attributes {stable_mosaic.version = 11 : i64} {
  func.func @bugnn_kernel(%arg0: i32, %arg1: memref<16x128xbf16, #tpu.memory_space<vmem>>, %arg2: memref<20x384xbf16, #tpu.memory_space<vmem>>, %arg3: memref<56x1xf32, #tpu.memory_space<vmem>>, %arg4: memref<8x128xf32, #tpu.memory_space<vmem>>) attributes {dimension_semantics = [#tpu.dimension_semantics<parallel>], iteration_bounds = array<i64: 2>, scalar_prefetch = 0 : i64, scratch_operands = 0 : i64, tpu.core_type = #tpu.core_type<tc>, window_params = [{transform_indices = @transform_0, window_bounds = array<i64: 16, 128>}, {pipeline_mode = #tpu.pipeline_mode<synchronous>, transform_indices = @transform_1, window_bounds = array<i64: 20, 384>}, {pipeline_mode = #tpu.pipeline_mode<synchronous>, transform_indices = @transform_2, window_bounds = array<i64: 56, 1>}, {transform_indices = @transform_3, window_bounds = array<i64: 8, 128>}]} {
    %c0 = arith.constant 0 : index
    %c0_0 = arith.constant 0 : index
    %0 = vector.load %arg2[%c0, %c0_0] : memref<20x384xbf16, #tpu.memory_space<vmem>>, vector<20x4xbf16>
    %c0_1 = arith.constant 0 : index
    %c128 = arith.constant 128 : index
    %1 = vector.load %arg2[%c0_1, %c128] : memref<20x384xbf16, #tpu.memory_space<vmem>>, vector<20x20xbf16>
    %c0_2 = arith.constant 0 : index
    %c256 = arith.constant 256 : index
    %2 = vector.load %arg2[%c0_2, %c256] : memref<20x384xbf16, #tpu.memory_space<vmem>>, vector<2x20xbf16>
    %c0_3 = arith.constant 0 : index
    %c0_4 = arith.constant 0 : index
    %3 = vector.load %arg3[%c0_3, %c0_4] : memref<56x1xf32, #tpu.memory_space<vmem>>, vector<20x1xf32>
    %c24 = arith.constant 24 : index
    %c0_5 = arith.constant 0 : index
    %4 = vector.load %arg3[%c24, %c0_5] : memref<56x1xf32, #tpu.memory_space<vmem>>, vector<20x1xf32>
    %c48 = arith.constant 48 : index
    %c0_6 = arith.constant 0 : index
    %5 = vector.load %arg3[%c48, %c0_6] : memref<56x1xf32, #tpu.memory_space<vmem>>, vector<2x1xf32>
    %c0_7 = arith.constant 0 : index
    %c0_8 = arith.constant 0 : index
    %6 = vector.load %arg1[%c0_7, %c0_8] : memref<16x128xbf16, #tpu.memory_space<vmem>>, vector<16x128xbf16>
    %7 = vector.extract_strided_slice %6 {offsets = [0, 0], sizes = [4, 128], strides = [1, 1]} : vector<16x128xbf16> to vector<4x128xbf16>
    %cst = arith.constant dense<0.000000e+00> : vector<20x128xf32>
    %8 = tpu.matmul %0, %7, %cst {dimension_numbers = #tpu.dot_dimension_numbers<[1], [0], [0], [1], [0, 0, 1, 1], [], []>} : vector<20x4xbf16>, vector<4x128xbf16>, vector<20x128xf32> -> vector<20x128xf32>
    %9 = vector.broadcast %3 : vector<20x1xf32> to vector<20x128xf32>
    %10 = arith.addf %8, %9 : vector<20x128xf32>
    %cst_9 = arith.constant 0.000000e+00 : f32
    %11 = vector.broadcast %cst_9 : f32 to vector<20x128xf32>
    %12 = arith.cmpf ogt, %10, %11 : vector<20x128xf32>
    %cst_10 = arith.constant 0.00999999977 : f32
    %13 = vector.broadcast %cst_10 : f32 to vector<20x128xf32>
    %14 = arith.mulf %13, %10 : vector<20x128xf32>
    %15 = arith.select %12, %10, %14 : vector<20x128xi1>, vector<20x128xf32>
    %16 = arith.truncf %15 : vector<20x128xf32> to vector<20x128xbf16>
    %cst_11 = arith.constant dense<0.000000e+00> : vector<20x128xf32>
    %17 = tpu.matmul %1, %16, %cst_11 {dimension_numbers = #tpu.dot_dimension_numbers<[1], [0], [0], [1], [0, 0, 1, 1], [], []>} : vector<20x20xbf16>, vector<20x128xbf16>, vector<20x128xf32> -> vector<20x128xf32>
    %18 = vector.broadcast %4 : vector<20x1xf32> to vector<20x128xf32>
    %19 = arith.addf %17, %18 : vector<20x128xf32>
    %cst_12 = arith.constant 0.000000e+00 : f32
    %20 = vector.broadcast %cst_12 : f32 to vector<20x128xf32>
    %21 = arith.cmpf ogt, %19, %20 : vector<20x128xf32>
    %cst_13 = arith.constant 0.00999999977 : f32
    %22 = vector.broadcast %cst_13 : f32 to vector<20x128xf32>
    %23 = arith.mulf %22, %19 : vector<20x128xf32>
    %24 = arith.select %21, %19, %23 : vector<20x128xi1>, vector<20x128xf32>
    %25 = arith.truncf %24 : vector<20x128xf32> to vector<20x128xbf16>
    %cst_14 = arith.constant dense<0.000000e+00> : vector<2x128xf32>
    %26 = tpu.matmul %2, %25, %cst_14 {dimension_numbers = #tpu.dot_dimension_numbers<[1], [0], [0], [1], [0, 0, 1, 1], [], []>} : vector<2x20xbf16>, vector<20x128xbf16>, vector<2x128xf32> -> vector<2x128xf32>
    %27 = vector.broadcast %5 : vector<2x1xf32> to vector<2x128xf32>
    %28 = arith.addf %26, %27 : vector<2x128xf32>
    %29 = math.tanh %28 : vector<2x128xf32>
    %30 = vector.extract_strided_slice %6 {offsets = [4, 0], sizes = [4, 128], strides = [1, 1]} : vector<16x128xbf16> to vector<4x128xbf16>
    %cst_15 = arith.constant dense<0.000000e+00> : vector<20x128xf32>
    %31 = tpu.matmul %0, %30, %cst_15 {dimension_numbers = #tpu.dot_dimension_numbers<[1], [0], [0], [1], [0, 0, 1, 1], [], []>} : vector<20x4xbf16>, vector<4x128xbf16>, vector<20x128xf32> -> vector<20x128xf32>
    %32 = vector.broadcast %3 : vector<20x1xf32> to vector<20x128xf32>
    %33 = arith.addf %31, %32 : vector<20x128xf32>
    %cst_16 = arith.constant 0.000000e+00 : f32
    %34 = vector.broadcast %cst_16 : f32 to vector<20x128xf32>
    %35 = arith.cmpf ogt, %33, %34 : vector<20x128xf32>
    %cst_17 = arith.constant 0.00999999977 : f32
    %36 = vector.broadcast %cst_17 : f32 to vector<20x128xf32>
    %37 = arith.mulf %36, %33 : vector<20x128xf32>
    %38 = arith.select %35, %33, %37 : vector<20x128xi1>, vector<20x128xf32>
    %39 = arith.truncf %38 : vector<20x128xf32> to vector<20x128xbf16>
    %cst_18 = arith.constant dense<0.000000e+00> : vector<20x128xf32>
    %40 = tpu.matmul %1, %39, %cst_18 {dimension_numbers = #tpu.dot_dimension_numbers<[1], [0], [0], [1], [0, 0, 1, 1], [], []>} : vector<20x20xbf16>, vector<20x128xbf16>, vector<20x128xf32> -> vector<20x128xf32>
    %41 = vector.broadcast %4 : vector<20x1xf32> to vector<20x128xf32>
    %42 = arith.addf %40, %41 : vector<20x128xf32>
    %cst_19 = arith.constant 0.000000e+00 : f32
    %43 = vector.broadcast %cst_19 : f32 to vector<20x128xf32>
    %44 = arith.cmpf ogt, %42, %43 : vector<20x128xf32>
    %cst_20 = arith.constant 0.00999999977 : f32
    %45 = vector.broadcast %cst_20 : f32 to vector<20x128xf32>
    %46 = arith.mulf %45, %42 : vector<20x128xf32>
    %47 = arith.select %44, %42, %46 : vector<20x128xi1>, vector<20x128xf32>
    %48 = arith.truncf %47 : vector<20x128xf32> to vector<20x128xbf16>
    %cst_21 = arith.constant dense<0.000000e+00> : vector<2x128xf32>
    %49 = tpu.matmul %2, %48, %cst_21 {dimension_numbers = #tpu.dot_dimension_numbers<[1], [0], [0], [1], [0, 0, 1, 1], [], []>} : vector<2x20xbf16>, vector<20x128xbf16>, vector<2x128xf32> -> vector<2x128xf32>
    %50 = vector.broadcast %5 : vector<2x1xf32> to vector<2x128xf32>
    %51 = arith.addf %49, %50 : vector<2x128xf32>
    %52 = math.tanh %51 : vector<2x128xf32>
    %53 = vector.extract_strided_slice %6 {offsets = [8, 0], sizes = [4, 128], strides = [1, 1]} : vector<16x128xbf16> to vector<4x128xbf16>
    %cst_22 = arith.constant dense<0.000000e+00> : vector<20x128xf32>
    %54 = tpu.matmul %0, %53, %cst_22 {dimension_numbers = #tpu.dot_dimension_numbers<[1], [0], [0], [1], [0, 0, 1, 1], [], []>} : vector<20x4xbf16>, vector<4x128xbf16>, vector<20x128xf32> -> vector<20x128xf32>
    %55 = vector.broadcast %3 : vector<20x1xf32> to vector<20x128xf32>
    %56 = arith.addf %54, %55 : vector<20x128xf32>
    %cst_23 = arith.constant 0.000000e+00 : f32
    %57 = vector.broadcast %cst_23 : f32 to vector<20x128xf32>
    %58 = arith.cmpf ogt, %56, %57 : vector<20x128xf32>
    %cst_24 = arith.constant 0.00999999977 : f32
    %59 = vector.broadcast %cst_24 : f32 to vector<20x128xf32>
    %60 = arith.mulf %59, %56 : vector<20x128xf32>
    %61 = arith.select %58, %56, %60 : vector<20x128xi1>, vector<20x128xf32>
    %62 = arith.truncf %61 : vector<20x128xf32> to vector<20x128xbf16>
    %cst_25 = arith.constant dense<0.000000e+00> : vector<20x128xf32>
    %63 = tpu.matmul %1, %62, %cst_25 {dimension_numbers = #tpu.dot_dimension_numbers<[1], [0], [0], [1], [0, 0, 1, 1], [], []>} : vector<20x20xbf16>, vector<20x128xbf16>, vector<20x128xf32> -> vector<20x128xf32>
    %64 = vector.broadcast %4 : vector<20x1xf32> to vector<20x128xf32>
    %65 = arith.addf %63, %64 : vector<20x128xf32>
    %cst_26 = arith.constant 0.000000e+00 : f32
    %66 = vector.broadcast %cst_26 : f32 to vector<20x128xf32>
    %67 = arith.cmpf ogt, %65, %66 : vector<20x128xf32>
    %cst_27 = arith.constant 0.00999999977 : f32
    %68 = vector.broadcast %cst_27 : f32 to vector<20x128xf32>
    %69 = arith.mulf %68, %65 : vector<20x128xf32>
    %70 = arith.select %67, %65, %69 : vector<20x128xi1>, vector<20x128xf32>
    %71 = arith.truncf %70 : vector<20x128xf32> to vector<20x128xbf16>
    %cst_28 = arith.constant dense<0.000000e+00> : vector<2x128xf32>
    %72 = tpu.matmul %2, %71, %cst_28 {dimension_numbers = #tpu.dot_dimension_numbers<[1], [0], [0], [1], [0, 0, 1, 1], [], []>} : vector<2x20xbf16>, vector<20x128xbf16>, vector<2x128xf32> -> vector<2x128xf32>
    %73 = vector.broadcast %5 : vector<2x1xf32> to vector<2x128xf32>
    %74 = arith.addf %72, %73 : vector<2x128xf32>
    %75 = math.tanh %74 : vector<2x128xf32>
    %76 = vector.extract_strided_slice %6 {offsets = [12, 0], sizes = [4, 128], strides = [1, 1]} : vector<16x128xbf16> to vector<4x128xbf16>
    %cst_29 = arith.constant dense<0.000000e+00> : vector<20x128xf32>
    %77 = tpu.matmul %0, %76, %cst_29 {dimension_numbers = #tpu.dot_dimension_numbers<[1], [0], [0], [1], [0, 0, 1, 1], [], []>} : vector<20x4xbf16>, vector<4x128xbf16>, vector<20x128xf32> -> vector<20x128xf32>
    %78 = vector.broadcast %3 : vector<20x1xf32> to vector<20x128xf32>
    %79 = arith.addf %77, %78 : vector<20x128xf32>
    %cst_30 = arith.constant 0.000000e+00 : f32
    %80 = vector.broadcast %cst_30 : f32 to vector<20x128xf32>
    %81 = arith.cmpf ogt, %79, %80 : vector<20x128xf32>
    %cst_31 = arith.constant 0.00999999977 : f32
    %82 = vector.broadcast %cst_31 : f32 to vector<20x128xf32>
    %83 = arith.mulf %82, %79 : vector<20x128xf32>
    %84 = arith.select %81, %79, %83 : vector<20x128xi1>, vector<20x128xf32>
    %85 = arith.truncf %84 : vector<20x128xf32> to vector<20x128xbf16>
    %cst_32 = arith.constant dense<0.000000e+00> : vector<20x128xf32>
    %86 = tpu.matmul %1, %85, %cst_32 {dimension_numbers = #tpu.dot_dimension_numbers<[1], [0], [0], [1], [0, 0, 1, 1], [], []>} : vector<20x20xbf16>, vector<20x128xbf16>, vector<20x128xf32> -> vector<20x128xf32>
    %87 = vector.broadcast %4 : vector<20x1xf32> to vector<20x128xf32>
    %88 = arith.addf %86, %87 : vector<20x128xf32>
    %cst_33 = arith.constant 0.000000e+00 : f32
    %89 = vector.broadcast %cst_33 : f32 to vector<20x128xf32>
    %90 = arith.cmpf ogt, %88, %89 : vector<20x128xf32>
    %cst_34 = arith.constant 0.00999999977 : f32
    %91 = vector.broadcast %cst_34 : f32 to vector<20x128xf32>
    %92 = arith.mulf %91, %88 : vector<20x128xf32>
    %93 = arith.select %90, %88, %92 : vector<20x128xi1>, vector<20x128xf32>
    %94 = arith.truncf %93 : vector<20x128xf32> to vector<20x128xbf16>
    %cst_35 = arith.constant dense<0.000000e+00> : vector<2x128xf32>
    %95 = tpu.matmul %2, %94, %cst_35 {dimension_numbers = #tpu.dot_dimension_numbers<[1], [0], [0], [1], [0, 0, 1, 1], [], []>} : vector<2x20xbf16>, vector<20x128xbf16>, vector<2x128xf32> -> vector<2x128xf32>
    %96 = vector.broadcast %5 : vector<2x1xf32> to vector<2x128xf32>
    %97 = arith.addf %95, %96 : vector<2x128xf32>
    %98 = math.tanh %97 : vector<2x128xf32>
    %99 = tpu.concatenate %29, %52, %75, %98 in 0 : vector<2x128xf32>, vector<2x128xf32>, vector<2x128xf32>, vector<2x128xf32> -> vector<8x128xf32>
    %c0_36 = arith.constant 0 : index
    %c0_37 = arith.constant 0 : index
    %100 = vector.load %arg4[%c0_36, %c0_37] : memref<8x128xf32, #tpu.memory_space<vmem>>, vector<8x128xf32>
    tpu.vector_store %arg4[%c0_36, %c0_37], %99 {strides = array<i32>} : memref<8x128xf32, #tpu.memory_space<vmem>>, vector<8x128xf32>,
    return
  }
  func.func @transform_0(%arg0: i32) -> (i32, i32) {
    %c0_i32 = arith.constant 0 : i32
    %c0_i32_0 = arith.constant 0 : i32
    return %c0_i32, %arg0 : i32, i32
  }
  func.func @transform_1(%arg0: i32) -> (i32, i32) {
    %c0_i32 = arith.constant 0 : i32
    %c0_i32_0 = arith.constant 0 : i32
    %c0_i32_1 = arith.constant 0 : i32
    return %c0_i32, %c0_i32_0 : i32, i32
  }
  func.func @transform_2(%arg0: i32) -> (i32, i32) {
    %c0_i32 = arith.constant 0 : i32
    %c0_i32_0 = arith.constant 0 : i32
    %c0_i32_1 = arith.constant 0 : i32
    return %c0_i32, %c0_i32_0 : i32, i32
  }
  func.func @transform_3(%arg0: i32) -> (i32, i32) {
    %c0_i32 = arith.constant 0 : i32
    %c0_i32_0 = arith.constant 0 : i32
    return %c0_i32, %arg0 : i32, i32
  }
}

</mosaic_0001>

<llo_original>
// kernel: tpu_custom_call.1
$region0: #{tpu_custom_call.1}
  #allocation0 [shape = 'u32[]', space=smem, size = 0x4, offset = 0x4, fixed_abs, tag = 'smem constant byte address 0x4 - core index']
  #allocation1 [shape = 'u32[144,128]{1,0:T(1,128)}', space=vmem, size = 0x12000, scoped, tag = 'internal scratch']
  %s0 = inlined_call_operand.vmem [shape: bf16[16,256], index: 0, kind: input, shape index: {}]
  %s1 = inlined_call_operand.vmem [shape: bf16[20,384], index: 1, kind: input, shape index: {}]
  %s2 = inlined_call_operand.vmem [shape: f32[56,1], index: 2, kind: input, shape index: {}]
  %s3 = inlined_call_operand.hbm [shape: f32[8,256], index: 3, kind: output, shape index: {}]
  %s4 = sld [smem:[#allocation0]]
  $region86: #{tpu_custom_call.1} parent=0
    _
  %s6 = ssub.s32 1, %s4
  %s7 = scalar_select 0, %s6, %s4
  $region1: #{tpu_custom_call.1} parent=0
    #allocation2 [shape = 'u8[8192]{0}', space=vmem, size = 0x2000, scoped, tag = 'input window, operand 0']
    #allocation3 [shape = 'u8[8192]{0}', space=vmem, size = 0x2000, scoped, tag = 'output window, operand 0']
    #allocation4 [shape = 's32[2]{0}', space=sflag, size = 0x8, scoped, tag = 'scoped memory for tpu_custom_call.1']
    %8 = vsyncpa [#allocation4], 0
    %s9 = scalar_lea.sflag [#allocation4], 1
    %10 = vsyncpa %s9, 0
    loop: start=0, step=1, limit=4
    $region2: #{tpu_custom_call.1} parent=1 // loop_pre_header
      _
    $region3: #{tpu_custom_call.1} parent=1 // loop_header
      %s12 = sphi 0, %s16
      %p13 = scmp.ge.s32.totalorder %s12, 4
      %s22 = sphi 0, %s24
      %s25 = sphi 0, %s22
      %s26 = sphi 0, %s25
      %s42 = sphi 0, %s26
      %s46 = sphi 0, %s46
      %s48 = sphi 0, %s46
      %s49 = sphi 0, %s48
      %s63 = sphi 0, %s49
      %s67 = sphi 0, %s67
      %s69 = sphi 0, %s67
      %s70 = sphi 0, %s69
      %s84 = sphi 0, %s70
      %s90 = sphi 0, %s92
      %s93 = sphi 0, %s90
      %s94 = sphi 0, %s93
      %s110 = sphi 0, %s94
    $region4: #{tpu_custom_call.1} parent=1 // loop_header_branch
      %15 = sbr.rel (%p13) target = $region8
    $region5: #{tpu_custom_call.1} parent=1 // loop_body
      %s17 = ssub.s32 %s12, 1
      %s18 = ssub.s32 %s12, 2
      %s19 = sadd.s32 %s12, 1
      %s20 = ssub.s32 %s12, %s19
      %p21 = scmp.eq.s32.totalorder %s20, 0
      %s23 = sadd.s32 %s22, 1
      %s24 = scalar_select %p21, %s22, %s23
      %p27 = pneg %p21
      %p28 = scmp.eq.s32.totalorder %s12, 1
      %p29 = por %p27, %p28
      %p30 = scmp.ne.s32.totalorder %s22, %s25
      %p31 = scmp.eq.s32.totalorder %s12, 0
      %p32 = por %p30, %p31
      %p33 = scmp.ne.s32.totalorder %s22, %s25
      %p34 = scmp.eq.s32.totalorder %s17, 1
      %p35 = por %p33, %p34
      %p36 = scmp.ne.s32.totalorder %s25, %s26
      %p37 = scmp.eq.s32.totalorder %s17, 0
      %p38 = por %p36, %p37
      %p39 = scmp.ne.s32.totalorder %s25, %s26
      %p40 = scmp.eq.s32.totalorder %s18, 1
      %p41 = por %p39, %p40
      %p43 = scmp.ne.s32.totalorder %s26, %s42
      %p44 = scmp.eq.s32.totalorder %s18, 0
      %p45 = por %p43, %p44
      %s47 = sadd.s32 %s46, 1
      %p50 = scmp.eq.s32.totalorder %s12, 1
      %p51 = scmp.ne.s32.totalorder %s46, %s48
      %p52 = scmp.eq.s32.totalorder %s12, 0
      %p53 = por %p51, %p52
      %p54 = scmp.ne.s32.totalorder %s46, %s48
      %p55 = scmp.eq.s32.totalorder %s17, 1
      %p56 = por %p54, %p55
      %p57 = scmp.ne.s32.totalorder %s48, %s49
      %p58 = scmp.eq.s32.totalorder %s17, 0
      %p59 = por %p57, %p58
      %p60 = scmp.ne.s32.totalorder %s48, %s49
      %p61 = scmp.eq.s32.totalorder %s18, 1
      %p62 = por %p60, %p61
      %p64 = scmp.ne.s32.totalorder %s49, %s63
      %p65 = scmp.eq.s32.totalorder %s18, 0
      %p66 = por %p64, %p65
      %s68 = sadd.s32 %s67, 1
      %p71 = scmp.eq.s32.totalorder %s12, 1
      %p72 = scmp.ne.s32.totalorder %s67, %s69
      %p73 = scmp.eq.s32.totalorder %s12, 0
      %p74 = por %p72, %p73
      %p75 = scmp.ne.s32.totalorder %s67, %s69
      %p76 = scmp.eq.s32.totalorder %s17, 1
      %p77 = por %p75, %p76
      %p78 = scmp.ne.s32.totalorder %s69, %s70
      %p79 = scmp.eq.s32.totalorder %s17, 0
      %p80 = por %p78, %p79
      %p81 = scmp.ne.s32.totalorder %s69, %s70
      %p82 = scmp.eq.s32.totalorder %s18, 1
      %p83 = por %p81, %p82
      %p85 = scmp.ne.s32.totalorder %s70, %s84
      %p86 = scmp.eq.s32.totalorder %s18, 0
      %p87 = por %p85, %p86
      %s88 = ssub.s32 %s12, %s19
      %p89 = scmp.eq.s32.totalorder %s88, 0
      %s91 = sadd.s32 %s90, 1
      %s92 = scalar_select %p89, %s90, %s91
      %p95 = pneg %p89
      %p96 = scmp.eq.s32.totalorder %s12, 1
      %p97 = por %p95, %p96
      %p98 = scmp.ne.s32.totalorder %s90, %s93
      %p99 = scmp.eq.s32.totalorder %s12, 0
      %p100 = por %p98, %p99
      %p101 = scmp.ne.s32.totalorder %s90, %s93
      %p102 = scmp.eq.s32.totalorder %s17, 1
      %p103 = por %p101, %p102
      %p104 = scmp.ne.s32.totalorder %s93, %s94
      %p105 = scmp.eq.s32.totalorder %s17, 0
      %p106 = por %p104, %p105
      %p107 = scmp.ne.s32.totalorder %s93, %s94
      %p108 = scmp.eq.s32.totalorder %s18, 1
      %p109 = por %p107, %p108
      %p111 = scmp.ne.s32.totalorder %s94, %s110
      %p112 = scmp.eq.s32.totalorder %s18, 0
      %p113 = por %p111, %p112
      %p114 = scmp.le.s32.totalorder 1, %s12
      %p115 = scmp.lt.s32.totalorder %s12, 3
      %p116 = pnand %p114, %p115
      %p117 = pneg %p116
      // Predicated region
      $region9: #{tpu_custom_call.1} parent=5 // pred_check
        _
      $region10: #{tpu_custom_call.1} parent=5 // pred_check_branch
        %119 = sbr.rel (%p116) target = $region12
      $region11: #{tpu_custom_call.1} parent=5 // pred_region
        %s120 = ssub.s32 %s12, 1
        // Predicated region
        $region13: #{tpu_custom_call.1} parent=11 // pred_check
          %p121 = pneg %p59
        $region14: #{tpu_custom_call.1} parent=11 // pred_check_branch
          %123 = sbr.rel (%p121) target = $region16
        $region15: #{tpu_custom_call.1} parent=11 // pred_region
          _
        $region16: #{tpu_custom_call.1} parent=11 // pred_fallthru
          _
        // Predicated region
        $region17: #{tpu_custom_call.1} parent=11 // pred_check
          %p124 = pneg %p80
        $region18: #{tpu_custom_call.1} parent=11 // pred_check_branch
          %126 = sbr.rel (%p124) target = $region20
        $region19: #{tpu_custom_call.1} parent=11 // pred_region
          _
        $region20: #{tpu_custom_call.1} parent=11 // pred_fallthru
          _
      $region12: #{tpu_custom_call.1} parent=5 // pred_fallthru
        _
      %p127 = scmp.lt.s32.totalorder %s12, 2
      // Predicated region
      $region21: #{tpu_custom_call.1} parent=5 // pred_check
        %p128 = pneg %p127
      $region22: #{tpu_custom_call.1} parent=5 // pred_check_branch
        %130 = sbr.rel (%p128) target = $region24
      $region23: #{tpu_custom_call.1} parent=5 // pred_region
        // Predicated region
        $region25: #{tpu_custom_call.1} parent=23 // pred_check
          %p131 = pneg %p32
        $region26: #{tpu_custom_call.1} parent=23 // pred_check_branch
          %133 = sbr.rel (%p131) target = $region28
        $region27: #{tpu_custom_call.1} parent=23 // pred_region
          %s134 = sand.u32 %s22, 1
          %s135 = sand.u32 %s22, 1
          %s136 = smul.addr %s135, 8
          %s137 = scalar_lea.vmem [#allocation2], %s136
          %s138 = smul.addr %s12, 4
          %s139 = scalar_lea.vmem %s0, %s138
          // Predicated region
          $region29: #{tpu_custom_call.1} parent=27 // pred_check
            _
          $region30: #{tpu_custom_call.1} parent=27 // pred_check_branch
            %141 = sbr.rel (0) target = $region32
          $region31: #{tpu_custom_call.1} parent=27 // pred_region
            // Predicated region
            $region33: #{tpu_custom_call.1} parent=31 // pred_check
              _
            $region34: #{tpu_custom_call.1} parent=31 // pred_check_branch
              %143 = sbr.rel target = $region36
            $region35: #{tpu_custom_call.1} parent=31 // pred_region
              // Predicated region
              $region48: #{tpu_custom_call.1} parent=35 // pred_check
                _
              $region49: #{tpu_custom_call.1} parent=35 // pred_check_branch
                %160 = sbr.rel (0) target = $region51
              $region50: #{tpu_custom_call.1} parent=35 // pred_region
                loop: start=0, step=1, limit=1
                $region52: #{tpu_custom_call.1} parent=50 // loop_pre_header
                  _
                $region53: #{tpu_custom_call.1} parent=50 // loop_header
                  %s162 = sphi 0, %s166
                  %p163 = scmp.ge.s32.totalorder %s162, 1
                  %s167 = sphi %s139, %s139
                  %s168 = sphi %s137, %s137
                $region54: #{tpu_custom_call.1} parent=50 // loop_header_branch
                  %165 = sbr.rel (%p163) target = $region58
                $region55: #{tpu_custom_call.1} parent=50 // loop_body
                  _
                $region56: #{tpu_custom_call.1} parent=50 // loop_footer
                  %s166 = sadd.s32 1, %s162
                $region57: #{tpu_custom_call.1} parent=50 // loop_footer_branch
                  %161 = sbr.rel target = $region53
                $region58: #{tpu_custom_call.1} parent=50 // loop_exit
                  _
                loop: start=0, step=1, limit=1
                $region59: #{tpu_custom_call.1} parent=50 // loop_pre_header
                  _
                $region60: #{tpu_custom_call.1} parent=50 // loop_header
                  %s171 = sphi 0, %s175
                  %p172 = scmp.ge.s32.totalorder %s171, 1
                  %s176 = sphi %s139, %s139
                  %s177 = sphi %s137, %s137
                $region61: #{tpu_custom_call.1} parent=50 // loop_header_branch
                  %174 = sbr.rel (%p172) target = $region65
                $region62: #{tpu_custom_call.1} parent=50 // loop_body
                  %v178 = vld [vmem:[%s176] sm:$0xf]
                  %179 = vst [vmem:[%s177] sm:$0xf] %v178
                  %v180 = vld [vmem:[%s176 + $0x8] sm:$0xf]
                  %181 = vst [vmem:[%s177 + $0x4] sm:$0xf] %v180
                $region63: #{tpu_custom_call.1} parent=50 // loop_footer
                  %s175 = sadd.s32 1, %s171
                $region64: #{tpu_custom_call.1} parent=50 // loop_footer_branch
                  %170 = sbr.rel target = $region60
                $region65: #{tpu_custom_call.1} parent=50 // loop_exit
                  _
              $region51: #{tpu_custom_call.1} parent=35 // pred_fallthru
                _
            $region36: #{tpu_custom_call.1} parent=31 // pred_fallthru
              _
            // Predicated region
            $region37: #{tpu_custom_call.1} parent=31 // pred_check
              _
            $region38: #{tpu_custom_call.1} parent=31 // pred_check_branch
              %145 = sbr.rel (0) target = $region40
            $region39: #{tpu_custom_call.1} parent=31 // pred_region
              loop: start=0, step=1, limit=1
              $region41: #{tpu_custom_call.1} parent=39 // loop_pre_header
                _
              $region42: #{tpu_custom_call.1} parent=39 // loop_header
                %s148 = sphi 0, %s152
                %p149 = scmp.ge.s32.totalorder %s148, 1
                %s153 = sphi %s139, %s139
                %s154 = sphi %s137, %s137
              $region43: #{tpu_custom_call.1} parent=39 // loop_header_branch
                %151 = sbr.rel (%p149) target = $region47
              $region44: #{tpu_custom_call.1} parent=39 // loop_body
                %v155 = vld [vmem:[%s153] sm:$0xf]
                %156 = vst [vmem:[%s154] sm:$0xf] %v155
                %v157 = vld [vmem:[%s153 + $0x8] sm:$0xf]
                %158 = vst [vmem:[%s154 + $0x4] sm:$0xf] %v157
              $region45: #{tpu_custom_call.1} parent=39 // loop_footer
                %s152 = sadd.s32 1, %s148
              $region46: #{tpu_custom_call.1} parent=39 // loop_footer_branch
                %147 = sbr.rel target = $region42
              $region47: #{tpu_custom_call.1} parent=39 // loop_exit
                _
            $region40: #{tpu_custom_call.1} parent=31 // pred_fallthru
              _
          $region32: #{tpu_custom_call.1} parent=27 // pred_fallthru
            _
          %182 = vnop
        $region28: #{tpu_custom_call.1} parent=23 // pred_fallthru
          _
      $region24: #{tpu_custom_call.1} parent=5 // pred_fallthru
        _
      %p183 = scmp.le.s32.totalorder 1, %s12
      %p184 = scmp.lt.s32.totalorder %s12, 3
      %p185 = pnand %p183, %p184
      %p186 = pneg %p185
      // Predicated region
      $region66: #{tpu_custom_call.1} parent=5 // pred_check
        _
      $region67: #{tpu_custom_call.1} parent=5 // pred_check_branch
        %188 = sbr.rel (%p185) target = $region69
      $region68: #{tpu_custom_call.1} parent=5 // pred_region
        %s189 = ssub.s32 %s12, 1
        %s190 = sand.u32 %s25, 1
        %s191 = sand.u32 %s25, 1
        %s192 = smul.addr %s191, 8
        %s193 = scalar_lea.vmem [#allocation2], %s192
        // Predicated region
        $region70: #{tpu_custom_call.1} parent=68 // pred_check
          %p194 = pneg %p38
        $region71: #{tpu_custom_call.1} parent=68 // pred_check_branch
          %196 = sbr.rel (%p194) target = $region73
        $region72: #{tpu_custom_call.1} parent=68 // pred_region
          _
        $region73: #{tpu_custom_call.1} parent=68 // pred_fallthru
          _
        %s197 = sand.u32 %s25, 1
        %s198 = sand.u32 %s25, 1
        %s199 = smul.addr %s198, 8
        %s200 = scalar_lea.vmem [#allocation2], %s199
        %p201 = pneg %p38
        %p202 = pneg %p35
        %p203 = pneg %p59
        %p204 = pneg %p56
        %p205 = pneg %p80
        %p206 = pneg %p77
        %p207 = pneg %p106
        %p208 = pneg %p103
        %s209 = sand.u32 %s93, 1
        %s210 = scalar_lea.sflag [#allocation4], %s209
        %s211 = sand.u32 %s93, 1
        %s212 = smul.addr %s211, 8
        %s213 = scalar_lea.vmem [#allocation3], %s212
        %v215 = vld [vmem:[%s1] sm:$0xf]
        %v216 = vld [vmem:[%s1 + $0xc] sm:$0xf]
        %v217 = vld [vmem:[%s1 + $0x18] sm:$0x3]
        %v218 = vld [vmem:[%s1 + $0x4] sm:$0xf]
        %v219 = vld [vmem:[%s1 + $0x10] sm:$0xf]
        %v220 = vld [vmem:[%s1 + $0x1c] sm:$0x3]
        %v221 = vld [vmem:[%s1 + $0x8] sm:$0x1]
        %v222 = vld [vmem:[%s2] sm:$0xff]
        %v223 = vld [vmem:[%s2 + $0x8] sm:$0xff]
        %v224 = vld [vmem:[%s2 + $0x10] sm:$0xf]
        %v225 = vld [vmem:[%s2 + $0x18] sm:$0xff]
        %v226 = vld [vmem:[%s2 + $0x20] sm:$0xff]
        %v227 = vld [vmem:[%s2 + $0x28] sm:$0xf]
        %v228 = vld [vmem:[%s2 + $0x30] sm:$0x3]
        %v229 = vld [vmem:[%s193] sm:$0xf]
        %v230 = vld [vmem:[%s193 + $0x4] sm:$0xf]
        %232 = vset.pattern.permute.xlu0 0
        %233 = vperm.xlu0 %232, %v222
        %v234 = vpop.permute.xlu0 %233
        %237 = vset.pattern.permute.xlu0 0
        %238 = vperm.xlu0 %237, %v223
        %v239 = vpop.permute.xlu0 %238
        %242 = vset.pattern.permute.xlu0 0
        %243 = vperm.xlu0 %242, %v224
        %v244 = vpop.permute.xlu0 %243
        %v249 = vunpack.c.l.b16 %v215
        %v250 = vunpack.c.l.b16 %v216
        %v251 = vunpack.c.l.b16 %v217
        %v252 = vpack.c.b16 %v250, %v249
        %v253 = vpack.c.b16 %v251, %v251
        %vm254 = vcmask 31744
        %v256 = vsel %vm254, %v252, 0
        %v259 = vsel %vm254, %v253, 0
        %vm261 = vcmask 1041408
        %v263 = vsel %vm261, %v229, 0
        %265 = vmatprep.subr.bf16.mxu0 0
        %266 = vmatpush1.bf16.msra.mxu0 %v263
        %267 = vmatprep.subr.bf16.mxu0 0
        %268 = vmatpush1.bf16.msra.mxu0 0
        %269 = vmatprep.subr.bf16.mxu0 0
        %270 = vmatpush1.bf16.msra.mxu0 0
        %271 = vmatprep.subr.bf16.mxu0 0
        %272 = vmatpush1.bf16.msra.mxu0 0
        %273 = vmatprep.subr.bf16.mxu0 0
        %274 = vmatpush1.bf16.msra.mxu0 0
        %275 = vmatprep.subr.bf16.mxu0 0
        %276 = vmatpush1.bf16.msra.mxu0 0
        %277 = vmatprep.subr.bf16.mxu0 0
        %278 = vmatpush1.bf16.msra.mxu0 0
        %279 = vmatprep.subr.bf16.mxu0 0
        %280 = vmatpush1.bf16.msra.mxu0 0
        %281 = vmatprep.subr.bf16.mxu0 0
        %282 = vmatpush1.bf16.msra.mxu0 0
        %283 = vmatprep.subr.bf16.mxu0 0
        %284 = vmatpush1.bf16.msra.mxu0 0
        %285 = vmatprep.subr.bf16.mxu0 0
        %286 = vmatpush1.bf16.msra.mxu0 0
        %287 = vmatprep.subr.bf16.mxu0 0
        %288 = vmatpush1.bf16.msra.mxu0 0
        %289 = vmatprep.subr.bf16.mxu0 0
        %290 = vmatpush1.bf16.msra.mxu0 0
        %291 = vmatprep.subr.bf16.mxu0 0
        %292 = vmatpush1.bf16.msra.mxu0 0
        %293 = vmatprep.subr.bf16.mxu0 0
        %294 = vmatpush1.bf16.msra.mxu0 0
        %295 = vmatprep.subr.bf16.mxu0 0
        %296 = vmatpush1.bf16.msra.mxu0 0
        %297 = vmatprep.mubr.bf16.mxu0 0
        %298 = vmatmul.mubr.bf16.gmra.mrb[0].mxu0 %v256
        %v299 = vpop.f32.mrb[0].mxu0
        %v300 = vadd.f32 %v234, %v299
        %v301 = vpop.f32.mrb[0].mxu0
        %v302 = vpop.f32.mrb[0].mxu0
        %v303 = vadd.f32 %v239, %v302
        %v304 = vpop.f32.mrb[0].mxu0
        %305 = vmatprep.mubr.bf16.mxu0 0
        %306 = vmatmul.mubr.bf16.gmra.mrb[0].mxu0 %v259
        %v307 = vpop.f32.mrb[0].mxu0
        %v308 = vadd.f32 %v244, %v307
        %v309 = vpop.f32.mrb[0].mxu0
        %v310 = vpop.f32.mrb[0].mxu0
        %v311 = vpop.f32.mrb[0].mxu0
        %312 = vdwg.mxu0
        %vm313 = vcmp.gt.f32.partialorder %v300, 0.0
        %vm314 = vcmp.gt.f32.partialorder %v303, 0.0
        %vm315 = vcmp.gt.f32.partialorder %v308, 0.0
        %v316 = vmul.f32 %v300, 0.01
        %v317 = vmul.f32 %v303, 0.01
        %v318 = vmul.f32 %v308, 0.01
        %v319 = vsel %vm313, %v300, %v316
        %v320 = vsel %vm314, %v303, %v317
        %v321 = vsel %vm315, %v308, %v318
        %v322 = vpack.c.bf16 %v320, %v319
        %v323 = vpack.c.bf16 %v321, %v321
        %325 = vset.pattern.permute.xlu0 0
        %326 = vperm.xlu0 %325, %v225
        %v327 = vpop.permute.xlu0 %326
        %330 = vset.pattern.permute.xlu0 0
        %331 = vperm.xlu0 %330, %v226
        %v332 = vpop.permute.xlu0 %331
        %335 = vset.pattern.permute.xlu0 0
        %336 = vperm.xlu0 %335, %v227
        %v337 = vpop.permute.xlu0 %336
        %v342 = vunpack.c.l.b16 %v218
        %v343 = vunpack.c.l.b16 %v219
        %v344 = vunpack.c.l.b16 %v220
        %v345 = vpack.c.b16 %v343, %v342
        %v346 = vpack.c.b16 %v344, %v344
        %vm347 = vcmask 162816
        %v349 = vsel %vm347, %v345, 0
        %v352 = vsel %vm347, %v346, 0
        %v355 = vsel %vm261, %v323, 0
        %357 = vmatprep.subr.bf16.mxu0 0
        %358 = vmatpush1.bf16.msra.mxu0 %v322
        %359 = vmatprep.subr.bf16.mxu0 0
        %360 = vmatpush1.bf16.msra.mxu0 %v355
        %361 = vmatprep.subr.bf16.mxu0 0
        %362 = vmatpush1.bf16.msra.mxu0 0
        %363 = vmatprep.subr.bf16.mxu0 0
        %364 = vmatpush1.bf16.msra.mxu0 0
        %365 = vmatprep.subr.bf16.mxu0 0
        %366 = vmatpush1.bf16.msra.mxu0 0
        %367 = vmatprep.subr.bf16.mxu0 0
        %368 = vmatpush1.bf16.msra.mxu0 0
        %369 = vmatprep.subr.bf16.mxu0 0
        %370 = vmatpush1.bf16.msra.mxu0 0
        %371 = vmatprep.subr.bf16.mxu0 0
        %372 = vmatpush1.bf16.msra.mxu0 0
        %373 = vmatprep.subr.bf16.mxu0 0
        %374 = vmatpush1.bf16.msra.mxu0 0
        %375 = vmatprep.subr.bf16.mxu0 0
        %376 = vmatpush1.bf16.msra.mxu0 0
        %377 = vmatprep.subr.bf16.mxu0 0
        %378 = vmatpush1.bf16.msra.mxu0 0
        %379 = vmatprep.subr.bf16.mxu0 0
        %380 = vmatpush1.bf16.msra.mxu0 0
        %381 = vmatprep.subr.bf16.mxu0 0
        %382 = vmatpush1.bf16.msra.mxu0 0
        %383 = vmatprep.subr.bf16.mxu0 0
        %384 = vmatpush1.bf16.msra.mxu0 0
        %385 = vmatprep.subr.bf16.mxu0 0
        %386 = vmatpush1.bf16.msra.mxu0 0
        %387 = vmatprep.subr.bf16.mxu0 0
        %388 = vmatpush1.bf16.msra.mxu0 0
        %389 = vmatprep.mubr.bf16.mxu0 0
        %390 = vmatmul.mubr.bf16.gmra.mrb[0].mxu0 %v349
        %v391 = vpop.f32.mrb[0].mxu0
        %v392 = vadd.f32 %v327, %v391
        %v393 = vpop.f32.mrb[0].mxu0
        %v394 = vpop.f32.mrb[0].mxu0
        %v395 = vadd.f32 %v332, %v394
        %v396 = vpop.f32.mrb[0].mxu0
        %397 = vmatprep.mubr.bf16.mxu0 0
        %398 = vmatmul.mubr.bf16.gmra.mrb[0].mxu0 %v352
        %v399 = vpop.f32.mrb[0].mxu0
        %v400 = vadd.f32 %v337, %v399
        %v401 = vpop.f32.mrb[0].mxu0
        %v402 = vpop.f32.mrb[0].mxu0
        %v403 = vpop.f32.mrb[0].mxu0
        %404 = vdwg.mxu0
        %vm405 = vcmp.gt.f32.partialorder %v392, 0.0
        %vm406 = vcmp.gt.f32.partialorder %v395, 0.0
        %vm407 = vcmp.gt.f32.partialorder %v400, 0.0
        %v408 = vmul.f32 %v392, 0.01
        %v409 = vmul.f32 %v395, 0.01
        %v410 = vmul.f32 %v400, 0.01
        %v411 = vsel %vm405, %v392, %v408
        %v412 = vsel %vm406, %v395, %v409
        %v413 = vsel %vm407, %v400, %v410
        %v414 = vpack.c.bf16 %v412, %v411
        %v415 = vpack.c.bf16 %v413, %v413
        %417 = vset.pattern.permute.xlu0 0
        %418 = vperm.xlu0 %417, %v228
        %v419 = vpop.permute.xlu0 %418
        %v422 = vsel %vm347, %v221, 0
        %v425 = vsel %vm261, %v415, 0
        %427 = vmatprep.subr.bf16.mxu0 0
        %428 = vmatpush1.bf16.msra.mxu0 %v414
        %429 = vmatprep.subr.bf16.mxu0 0
        %430 = vmatpush1.bf16.msra.mxu0 %v425
        %431 = vmatprep.subr.bf16.mxu0 0
        %432 = vmatpush1.bf16.msra.mxu0 0
        %433 = vmatprep.subr.bf16.mxu0 0
        %434 = vmatpush1.bf16.msra.mxu0 0
        %435 = vmatprep.subr.bf16.mxu0 0
        %436 = vmatpush1.bf16.msra.mxu0 0
        %437 = vmatprep.subr.bf16.mxu0 0
        %438 = vmatpush1.bf16.msra.mxu0 0
        %439 = vmatprep.subr.bf16.mxu0 0
        %440 = vmatpush1.bf16.msra.mxu0 0
        %441 = vmatprep.subr.bf16.mxu0 0
        %442 = vmatpush1.bf16.msra.mxu0 0
        %443 = vmatprep.subr.bf16.mxu0 0
        %444 = vmatpush1.bf16.msra.mxu0 0
        %445 = vmatprep.subr.bf16.mxu0 0
        %446 = vmatpush1.bf16.msra.mxu0 0
        %447 = vmatprep.subr.bf16.mxu0 0
        %448 = vmatpush1.bf16.msra.mxu0 0
        %449 = vmatprep.subr.bf16.mxu0 0
        %450 = vmatpush1.bf16.msra.mxu0 0
        %451 = vmatprep.subr.bf16.mxu0 0
        %452 = vmatpush1.bf16.msra.mxu0 0
        %453 = vmatprep.subr.bf16.mxu0 0
        %454 = vmatpush1.bf16.msra.mxu0 0
        %455 = vmatprep.subr.bf16.mxu0 0
        %456 = vmatpush1.bf16.msra.mxu0 0
        %457 = vmatprep.subr.bf16.mxu0 0
        %458 = vmatpush1.bf16.msra.mxu0 0
        %459 = vmatprep.mubr.bf16.mxu0 0
        %460 = vmatmul.mubr.bf16.gmra.mrb[0].mxu0 %v422
        %v461 = vpop.f32.mrb[0].mxu0
        %v462 = vadd.f32 %v419, %v461
        %v463 = vpop.f32.mrb[0].mxu0
        %v464 = vpop.f32.mrb[0].mxu0
        %v465 = vpop.f32.mrb[0].mxu0
        %466 = vdwg.mxu0
        %v467 = vtanh.pop %v462
        %v469 = vunpack.c.l.b16 %v229
        %v470 = vpack.c.b16 %v469, %v469
        %v471 = vrot.slane %v470, 2
        %v473 = vsel %vm261, %v471, 0
        %475 = vmatprep.subr.bf16.mxu0 0
        %476 = vmatpush1.bf16.msra.mxu0 %v473
        %477 = vmatprep.subr.bf16.mxu0 0
        %478 = vmatpush1.bf16.msra.mxu0 0
        %479 = vmatprep.subr.bf16.mxu0 0
        %480 = vmatpush1.bf16.msra.mxu0 0
        %481 = vmatprep.subr.bf16.mxu0 0
        %482 = vmatpush1.bf16.msra.mxu0 0
        %483 = vmatprep.subr.bf16.mxu0 0
        %484 = vmatpush1.bf16.msra.mxu0 0
        %485 = vmatprep.subr.bf16.mxu0 0
        %486 = vmatpush1.bf16.msra.mxu0 0
        %487 = vmatprep.subr.bf16.mxu0 0
        %488 = vmatpush1.bf16.msra.mxu0 0
        %489 = vmatprep.subr.bf16.mxu0 0
        %490 = vmatpush1.bf16.msra.mxu0 0
        %491 = vmatprep.subr.bf16.mxu0 0
        %492 = vmatpush1.bf16.msra.mxu0 0
        %493 = vmatprep.subr.bf16.mxu0 0
        %494 = vmatpush1.bf16.msra.mxu0 0
        %495 = vmatprep.subr.bf16.mxu0 0
        %496 = vmatpush1.bf16.msra.mxu0 0
        %497 = vmatprep.subr.bf16.mxu0 0
        %498 = vmatpush1.bf16.msra.mxu0 0
        %499 = vmatprep.subr.bf16.mxu0 0
        %500 = vmatpush1.bf16.msra.mxu0 0
        %501 = vmatprep.subr.bf16.mxu0 0
        %502 = vmatpush1.bf16.msra.mxu0 0
        %503 = vmatprep.subr.bf16.mxu0 0
        %504 = vmatpush1.bf16.msra.mxu0 0
        %505 = vmatprep.subr.bf16.mxu0 0
        %506 = vmatpush1.bf16.msra.mxu0 0
        %507 = vmatprep.mubr.bf16.mxu0 0
        %508 = vmatmul.mubr.bf16.gmra.mrb[0].mxu0 %v256
        %v509 = vpop.f32.mrb[0].mxu0
        %v510 = vadd.f32 %v234, %v509
        %v511 = vpop.f32.mrb[0].mxu0
        %v512 = vpop.f32.mrb[0].mxu0
        %v513 = vadd.f32 %v239, %v512
        %v514 = vpop.f32.mrb[0].mxu0
        %515 = vmatprep.mubr.bf16.mxu0 0
        %516 = vmatmul.mubr.bf16.gmra.mrb[0].mxu0 %v259
        %v517 = vpop.f32.mrb[0].mxu0
        %v518 = vadd.f32 %v244, %v517
        %v519 = vpop.f32.mrb[0].mxu0
        %v520 = vpop.f32.mrb[0].mxu0
        %v521 = vpop.f32.mrb[0].mxu0
        %522 = vdwg.mxu0
        %vm523 = vcmp.gt.f32.partialorder %v510, 0.0
        %vm524 = vcmp.gt.f32.partialorder %v513, 0.0
        %vm525 = vcmp.gt.f32.partialorder %v518, 0.0
        %v526 = vmul.f32 %v510, 0.01
        %v527 = vmul.f32 %v513, 0.01
        %v528 = vmul.f32 %v518, 0.01
        %v529 = vsel %vm523, %v510, %v526
        %v530 = vsel %vm524, %v513, %v527
        %v531 = vsel %vm525, %v518, %v528
        %v532 = vpack.c.bf16 %v530, %v529
        %v533 = vpack.c.bf16 %v531, %v531
        %v535 = vsel %vm261, %v533, 0
        %537 = vmatprep.subr.bf16.mxu0 0
        %538 = vmatpush1.bf16.msra.mxu0 %v532
        %539 = vmatprep.subr.bf16.mxu0 0
        %540 = vmatpush1.bf16.msra.mxu0 %v535
        %541 = vmatprep.subr.bf16.mxu0 0
        %542 = vmatpush1.bf16.msra.mxu0 0
        %543 = vmatprep.subr.bf16.mxu0 0
        %544 = vmatpush1.bf16.msra.mxu0 0
        %545 = vmatprep.subr.bf16.mxu0 0
        %546 = vmatpush1.bf16.msra.mxu0 0
        %547 = vmatprep.subr.bf16.mxu0 0
        %548 = vmatpush1.bf16.msra.mxu0 0
        %549 = vmatprep.subr.bf16.mxu0 0
        %550 = vmatpush1.bf16.msra.mxu0 0
        %551 = vmatprep.subr.bf16.mxu0 0
        %552 = vmatpush1.bf16.msra.mxu0 0
        %553 = vmatprep.subr.bf16.mxu0 0
        %554 = vmatpush1.bf16.msra.mxu0 0
        %555 = vmatprep.subr.bf16.mxu0 0
        %556 = vmatpush1.bf16.msra.mxu0 0
        %557 = vmatprep.subr.bf16.mxu0 0
        %558 = vmatpush1.bf16.msra.mxu0 0
        %559 = vmatprep.subr.bf16.mxu0 0
        %560 = vmatpush1.bf16.msra.mxu0 0
        %561 = vmatprep.subr.bf16.mxu0 0
        %562 = vmatpush1.bf16.msra.mxu0 0
        %563 = vmatprep.subr.bf16.mxu0 0
        %564 = vmatpush1.bf16.msra.mxu0 0
        %565 = vmatprep.subr.bf16.mxu0 0
        %566 = vmatpush1.bf16.msra.mxu0 0
        %567 = vmatprep.subr.bf16.mxu0 0
        %568 = vmatpush1.bf16.msra.mxu0 0
        %569 = vmatprep.mubr.bf16.mxu0 0
        %570 = vmatmul.mubr.bf16.gmra.mrb[0].mxu0 %v349
        %v571 = vpop.f32.mrb[0].mxu0
        %v572 = vadd.f32 %v327, %v571
        %v573 = vpop.f32.mrb[0].mxu0
        %v574 = vpop.f32.mrb[0].mxu0
        %v575 = vadd.f32 %v332, %v574
        %v576 = vpop.f32.mrb[0].mxu0
        %577 = vmatprep.mubr.bf16.mxu0 0
        %578 = vmatmul.mubr.bf16.gmra.mrb[0].mxu0 %v352
        %v579 = vpop.f32.mrb[0].mxu0
        %v580 = vadd.f32 %v337, %v579
        %v581 = vpop.f32.mrb[0].mxu0
        %v582 = vpop.f32.mrb[0].mxu0
        %v583 = vpop.f32.mrb[0].mxu0
        %584 = vdwg.mxu0
        %vm585 = vcmp.gt.f32.partialorder %v572, 0.0
        %vm586 = vcmp.gt.f32.partialorder %v575, 0.0
        %vm587 = vcmp.gt.f32.partialorder %v580, 0.0
        %v588 = vmul.f32 %v572, 0.01
        %v589 = vmul.f32 %v575, 0.01
        %v590 = vmul.f32 %v580, 0.01
        %v591 = vsel %vm585, %v572, %v588
        %v592 = vsel %vm586, %v575, %v589
        %v593 = vsel %vm587, %v580, %v590
        %v594 = vpack.c.bf16 %v592, %v591
        %v595 = vpack.c.bf16 %v593, %v593
        %v597 = vsel %vm261, %v595, 0
        %599 = vmatprep.subr.bf16.mxu0 0
        %600 = vmatpush1.bf16.msra.mxu0 %v594
        %601 = vmatprep.subr.bf16.mxu0 0
        %602 = vmatpush1.bf16.msra.mxu0 %v597
        %603 = vmatprep.subr.bf16.mxu0 0
        %604 = vmatpush1.bf16.msra.mxu0 0
        %605 = vmatprep.subr.bf16.mxu0 0
        %606 = vmatpush1.bf16.msra.mxu0 0
        %607 = vmatprep.subr.bf16.mxu0 0
        %608 = vmatpush1.bf16.msra.mxu0 0
        %609 = vmatprep.subr.bf16.mxu0 0
        %610 = vmatpush1.bf16.msra.mxu0 0
        %611 = vmatprep.subr.bf16.mxu0 0
        %612 = vmatpush1.bf16.msra.mxu0 0
        %613 = vmatprep.subr.bf16.mxu0 0
        %614 = vmatpush1.bf16.msra.mxu0 0
        %615 = vmatprep.subr.bf16.mxu0 0
        %616 = vmatpush1.bf16.msra.mxu0 0
        %617 = vmatprep.subr.bf16.mxu0 0
        %618 = vmatpush1.bf16.msra.mxu0 0
        %619 = vmatprep.subr.bf16.mxu0 0
        %620 = vmatpush1.bf16.msra.mxu0 0
        %621 = vmatprep.subr.bf16.mxu0 0
        %622 = vmatpush1.bf16.msra.mxu0 0
        %623 = vmatprep.subr.bf16.mxu0 0
        %624 = vmatpush1.bf16.msra.mxu0 0
        %625 = vmatprep.subr.bf16.mxu0 0
        %626 = vmatpush1.bf16.msra.mxu0 0
        %627 = vmatprep.subr.bf16.mxu0 0
        %628 = vmatpush1.bf16.msra.mxu0 0
        %629 = vmatprep.subr.bf16.mxu0 0
        %630 = vmatpush1.bf16.msra.mxu0 0
        %631 = vmatprep.mubr.bf16.mxu0 0
        %632 = vmatmul.mubr.bf16.gmra.mrb[0].mxu0 %v422
        %v633 = vpop.f32.mrb[0].mxu0
        %v634 = vadd.f32 %v419, %v633
        %v635 = vpop.f32.mrb[0].mxu0
        %v636 = vpop.f32.mrb[0].mxu0
        %v637 = vpop.f32.mrb[0].mxu0
        %638 = vdwg.mxu0
        %v639 = vtanh.pop %v634
        %v641 = vsel %vm261, %v230, 0
        %643 = vmatprep.subr.bf16.mxu0 0
        %644 = vmatpush1.bf16.msra.mxu0 %v641
        %645 = vmatprep.subr.bf16.mxu0 0
        %646 = vmatpush1.bf16.msra.mxu0 0
        %647 = vmatprep.subr.bf16.mxu0 0
        %648 = vmatpush1.bf16.msra.mxu0 0
        %649 = vmatprep.subr.bf16.mxu0 0
        %650 = vmatpush1.bf16.msra.mxu0 0
        %651 = vmatprep.subr.bf16.mxu0 0
        %652 = vmatpush1.bf16.msra.mxu0 0
        %653 = vmatprep.subr.bf16.mxu0 0
        %654 = vmatpush1.bf16.msra.mxu0 0
        %655 = vmatprep.subr.bf16.mxu0 0
        %656 = vmatpush1.bf16.msra.mxu0 0
        %657 = vmatprep.subr.bf16.mxu0 0
        %658 = vmatpush1.bf16.msra.mxu0 0
        %659 = vmatprep.subr.bf16.mxu0 0
        %660 = vmatpush1.bf16.msra.mxu0 0
        %661 = vmatprep.subr.bf16.mxu0 0
        %662 = vmatpush1.bf16.msra.mxu0 0
        %663 = vmatprep.subr.bf16.mxu0 0
        %664 = vmatpush1.bf16.msra.mxu0 0
        %665 = vmatprep.subr.bf16.mxu0 0
        %666 = vmatpush1.bf16.msra.mxu0 0
        %667 = vmatprep.subr.bf16.mxu0 0
        %668 = vmatpush1.bf16.msra.mxu0 0
        %669 = vmatprep.subr.bf16.mxu0 0
        %670 = vmatpush1.bf16.msra.mxu0 0
        %671 = vmatprep.subr.bf16.mxu0 0
        %672 = vmatpush1.bf16.msra.mxu0 0
        %673 = vmatprep.subr.bf16.mxu0 0
        %674 = vmatpush1.bf16.msra.mxu0 0
        %675 = vmatprep.mubr.bf16.mxu0 0
        %676 = vmatmul.mubr.bf16.gmra.mrb[0].mxu0 %v256
        %v677 = vpop.f32.mrb[0].mxu0
        %v678 = vadd.f32 %v234, %v677
        %v679 = vpop.f32.mrb[0].mxu0
        %v680 = vpop.f32.mrb[0].mxu0
        %v681 = vadd.f32 %v239, %v680
        %v682 = vpop.f32.mrb[0].mxu0
        %683 = vmatprep.mubr.bf16.mxu0 0
        %684 = vmatmul.mubr.bf16.gmra.mrb[0].mxu0 %v259
        %v685 = vpop.f32.mrb[0].mxu0
        %v686 = vadd.f32 %v244, %v685
        %v687 = vpop.f32.mrb[0].mxu0
        %v688 = vpop.f32.mrb[0].mxu0
        %v689 = vpop.f32.mrb[0].mxu0
        %690 = vdwg.mxu0
        %vm691 = vcmp.gt.f32.partialorder %v678, 0.0
        %vm692 = vcmp.gt.f32.partialorder %v681, 0.0
        %vm693 = vcmp.gt.f32.partialorder %v686, 0.0
        %v694 = vmul.f32 %v678, 0.01
        %v695 = vmul.f32 %v681, 0.01
        %v696 = vmul.f32 %v686, 0.01
        %v697 = vsel %vm691, %v678, %v694
        %v698 = vsel %vm692, %v681, %v695
        %v699 = vsel %vm693, %v686, %v696
        %v700 = vpack.c.bf16 %v698, %v697
        %v701 = vpack.c.bf16 %v699, %v699
        %v703 = vsel %vm261, %v701, 0
        %705 = vmatprep.subr.bf16.mxu0 0
        %706 = vmatpush1.bf16.msra.mxu0 %v700
        %707 = vmatprep.subr.bf16.mxu0 0
        %708 = vmatpush1.bf16.msra.mxu0 %v703
        %709 = vmatprep.subr.bf16.mxu0 0
        %710 = vmatpush1.bf16.msra.mxu0 0
        %711 = vmatprep.subr.bf16.mxu0 0
        %712 = vmatpush1.bf16.msra.mxu0 0
        %713 = vmatprep.subr.bf16.mxu0 0
        %714 = vmatpush1.bf16.msra.mxu0 0
        %715 = vmatprep.subr.bf16.mxu0 0
        %716 = vmatpush1.bf16.msra.mxu0 0
        %717 = vmatprep.subr.bf16.mxu0 0
        %718 = vmatpush1.bf16.msra.mxu0 0
        %719 = vmatprep.subr.bf16.mxu0 0
        %720 = vmatpush1.bf16.msra.mxu0 0
        %721 = vmatprep.subr.bf16.mxu0 0
        %722 = vmatpush1.bf16.msra.mxu0 0
        %723 = vmatprep.subr.bf16.mxu0 0
        %724 = vmatpush1.bf16.msra.mxu0 0
        %725 = vmatprep.subr.bf16.mxu0 0
        %726 = vmatpush1.bf16.msra.mxu0 0
        %727 = vmatprep.subr.bf16.mxu0 0
        %728 = vmatpush1.bf16.msra.mxu0 0
        %729 = vmatprep.subr.bf16.mxu0 0
        %730 = vmatpush1.bf16.msra.mxu0 0
        %731 = vmatprep.subr.bf16.mxu0 0
        %732 = vmatpush1.bf16.msra.mxu0 0
        %733 = vmatprep.subr.bf16.mxu0 0
        %734 = vmatpush1.bf16.msra.mxu0 0
        %735 = vmatprep.subr.bf16.mxu0 0
        %736 = vmatpush1.bf16.msra.mxu0 0
        %737 = vmatprep.mubr.bf16.mxu0 0
        %738 = vmatmul.mubr.bf16.gmra.mrb[0].mxu0 %v349
        %v739 = vpop.f32.mrb[0].mxu0
        %v740 = vadd.f32 %v327, %v739
        %v741 = vpop.f32.mrb[0].mxu0
        %v742 = vpop.f32.mrb[0].mxu0
        %v743 = vadd.f32 %v332, %v742
        %v744 = vpop.f32.mrb[0].mxu0
        %745 = vmatprep.mubr.bf16.mxu0 0
        %746 = vmatmul.mubr.bf16.gmra.mrb[0].mxu0 %v352
        %v747 = vpop.f32.mrb[0].mxu0
        %v748 = vadd.f32 %v337, %v747
        %v749 = vpop.f32.mrb[0].mxu0
        %v750 = vpop.f32.mrb[0].mxu0
        %v751 = vpop.f32.mrb[0].mxu0
        %752 = vdwg.mxu0
        %vm753 = vcmp.gt.f32.partialorder %v740, 0.0
        %vm754 = vcmp.gt.f32.partialorder %v743, 0.0
        %vm755 = vcmp.gt.f32.partialorder %v748, 0.0
        %v756 = vmul.f32 %v740, 0.01
        %v757 = vmul.f32 %v743, 0.01
        %v758 = vmul.f32 %v748, 0.01
        %v759 = vsel %vm753, %v740, %v756
        %v760 = vsel %vm754, %v743, %v757
        %v761 = vsel %vm755, %v748, %v758
        %v762 = vpack.c.bf16 %v760, %v759
        %v763 = vpack.c.bf16 %v761, %v761
        %v765 = vsel %vm261, %v763, 0
        %767 = vmatprep.subr.bf16.mxu0 0
        %768 = vmatpush1.bf16.msra.mxu0 %v762
        %769 = vmatprep.subr.bf16.mxu0 0
        %770 = vmatpush1.bf16.msra.mxu0 %v765
        %771 = vmatprep.subr.bf16.mxu0 0
        %772 = vmatpush1.bf16.msra.mxu0 0
        %773 = vmatprep.subr.bf16.mxu0 0
        %774 = vmatpush1.bf16.msra.mxu0 0
        %775 = vmatprep.subr.bf16.mxu0 0
        %776 = vmatpush1.bf16.msra.mxu0 0
        %777 = vmatprep.subr.bf16.mxu0 0
        %778 = vmatpush1.bf16.msra.mxu0 0
        %779 = vmatprep.subr.bf16.mxu0 0
        %780 = vmatpush1.bf16.msra.mxu0 0
        %781 = vmatprep.subr.bf16.mxu0 0
        %782 = vmatpush1.bf16.msra.mxu0 0
        %783 = vmatprep.subr.bf16.mxu0 0
        %784 = vmatpush1.bf16.msra.mxu0 0
        %785 = vmatprep.subr.bf16.mxu0 0
        %786 = vmatpush1.bf16.msra.mxu0 0
        %787 = vmatprep.subr.bf16.mxu0 0
        %788 = vmatpush1.bf16.msra.mxu0 0
        %789 = vmatprep.subr.bf16.mxu0 0
        %790 = vmatpush1.bf16.msra.mxu0 0
        %791 = vmatprep.subr.bf16.mxu0 0
        %792 = vmatpush1.bf16.msra.mxu0 0
        %793 = vmatprep.subr.bf16.mxu0 0
        %794 = vmatpush1.bf16.msra.mxu0 0
        %795 = vmatprep.subr.bf16.mxu0 0
        %796 = vmatpush1.bf16.msra.mxu0 0
        %797 = vmatprep.subr.bf16.mxu0 0
        %798 = vmatpush1.bf16.msra.mxu0 0
        %799 = vmatprep.mubr.bf16.mxu0 0
        %800 = vmatmul.mubr.bf16.gmra.mrb[0].mxu0 %v422
        %v801 = vpop.f32.mrb[0].mxu0
        %v802 = vadd.f32 %v419, %v801
        %v803 = vpop.f32.mrb[0].mxu0
        %v804 = vpop.f32.mrb[0].mxu0
        %v805 = vpop.f32.mrb[0].mxu0
        %806 = vdwg.mxu0
        %v807 = vtanh.pop %v802
        %v809 = vunpack.c.l.b16 %v230
        %v810 = vpack.c.b16 %v809, %v809
        %v811 = vrot.slane %v810, 2
        %v813 = vsel %vm261, %v811, 0
        %815 = vmatprep.subr.bf16.mxu0 0
        %816 = vmatpush1.bf16.msra.mxu0 %v813
        %817 = vmatprep.subr.bf16.mxu0 0
        %818 = vmatpush1.bf16.msra.mxu0 0
        %819 = vmatprep.subr.bf16.mxu0 0
        %820 = vmatpush1.bf16.msra.mxu0 0
        %821 = vmatprep.subr.bf16.mxu0 0
        %822 = vmatpush1.bf16.msra.mxu0 0
        %823 = vmatprep.subr.bf16.mxu0 0
        %824 = vmatpush1.bf16.msra.mxu0 0
        %825 = vmatprep.subr.bf16.mxu0 0
        %826 = vmatpush1.bf16.msra.mxu0 0
        %827 = vmatprep.subr.bf16.mxu0 0
        %828 = vmatpush1.bf16.msra.mxu0 0
        %829 = vmatprep.subr.bf16.mxu0 0
        %830 = vmatpush1.bf16.msra.mxu0 0
        %831 = vmatprep.subr.bf16.mxu0 0
        %832 = vmatpush1.bf16.msra.mxu0 0
        %833 = vmatprep.subr.bf16.mxu0 0
        %834 = vmatpush1.bf16.msra.mxu0 0
        %835 = vmatprep.subr.bf16.mxu0 0
        %836 = vmatpush1.bf16.msra.mxu0 0
        %837 = vmatprep.subr.bf16.mxu0 0
        %838 = vmatpush1.bf16.msra.mxu0 0
        %839 = vmatprep.subr.bf16.mxu0 0
        %840 = vmatpush1.bf16.msra.mxu0 0
        %841 = vmatprep.subr.bf16.mxu0 0
        %842 = vmatpush1.bf16.msra.mxu0 0
        %843 = vmatprep.subr.bf16.mxu0 0
        %844 = vmatpush1.bf16.msra.mxu0 0
        %845 = vmatprep.subr.bf16.mxu0 0
        %846 = vmatpush1.bf16.msra.mxu0 0
        %847 = vmatprep.mubr.bf16.mxu0 0
        %848 = vmatmul.mubr.bf16.gmra.mrb[0].mxu0 %v256
        %v849 = vpop.f32.mrb[0].mxu0
        %v850 = vadd.f32 %v234, %v849
        %v851 = vpop.f32.mrb[0].mxu0
        %v852 = vpop.f32.mrb[0].mxu0
        %v853 = vadd.f32 %v239, %v852
        %v854 = vpop.f32.mrb[0].mxu0
        %855 = vmatprep.mubr.bf16.mxu0 0
        %856 = vmatmul.mubr.bf16.gmra.mrb[0].mxu0 %v259
        %v857 = vpop.f32.mrb[0].mxu0
        %v858 = vadd.f32 %v244, %v857
        %v859 = vpop.f32.mrb[0].mxu0
        %v860 = vpop.f32.mrb[0].mxu0
        %v861 = vpop.f32.mrb[0].mxu0
        %862 = vdwg.mxu0
        %vm863 = vcmp.gt.f32.partialorder %v850, 0.0
        %vm864 = vcmp.gt.f32.partialorder %v853, 0.0
        %vm865 = vcmp.gt.f32.partialorder %v858, 0.0
        %v866 = vmul.f32 %v850, 0.01
        %v867 = vmul.f32 %v853, 0.01
        %v868 = vmul.f32 %v858, 0.01
        %v869 = vsel %vm863, %v850, %v866
        %v870 = vsel %vm864, %v853, %v867
        %v871 = vsel %vm865, %v858, %v868
        %v872 = vpack.c.bf16 %v870, %v869
        %v873 = vpack.c.bf16 %v871, %v871
        %v875 = vsel %vm261, %v873, 0
        %877 = vmatprep.subr.bf16.mxu0 0
        %878 = vmatpush1.bf16.msra.mxu0 %v872
        %879 = vmatprep.subr.bf16.mxu0 0
        %880 = vmatpush1.bf16.msra.mxu0 %v875
        %881 = vmatprep.subr.bf16.mxu0 0
        %882 = vmatpush1.bf16.msra.mxu0 0
        %883 = vmatprep.subr.bf16.mxu0 0
        %884 = vmatpush1.bf16.msra.mxu0 0
        %885 = vmatprep.subr.bf16.mxu0 0
        %886 = vmatpush1.bf16.msra.mxu0 0
        %887 = vmatprep.subr.bf16.mxu0 0
        %888 = vmatpush1.bf16.msra.mxu0 0
        %889 = vmatprep.subr.bf16.mxu0 0
        %890 = vmatpush1.bf16.msra.mxu0 0
        %891 = vmatprep.subr.bf16.mxu0 0
        %892 = vmatpush1.bf16.msra.mxu0 0
        %893 = vmatprep.subr.bf16.mxu0 0
        %894 = vmatpush1.bf16.msra.mxu0 0
        %895 = vmatprep.subr.bf16.mxu0 0
        %896 = vmatpush1.bf16.msra.mxu0 0
        %897 = vmatprep.subr.bf16.mxu0 0
        %898 = vmatpush1.bf16.msra.mxu0 0
        %899 = vmatprep.subr.bf16.mxu0 0
        %900 = vmatpush1.bf16.msra.mxu0 0
        %901 = vmatprep.subr.bf16.mxu0 0
        %902 = vmatpush1.bf16.msra.mxu0 0
        %903 = vmatprep.subr.bf16.mxu0 0
        %904 = vmatpush1.bf16.msra.mxu0 0
        %905 = vmatprep.subr.bf16.mxu0 0
        %906 = vmatpush1.bf16.msra.mxu0 0
        %907 = vmatprep.subr.bf16.mxu0 0
        %908 = vmatpush1.bf16.msra.mxu0 0
        %909 = vmatprep.mubr.bf16.mxu0 0
        %910 = vmatmul.mubr.bf16.gmra.mrb[0].mxu0 %v349
        %v911 = vpop.f32.mrb[0].mxu0
        %v912 = vadd.f32 %v327, %v911
        %v913 = vpop.f32.mrb[0].mxu0
        %v914 = vpop.f32.mrb[0].mxu0
        %v915 = vadd.f32 %v332, %v914
        %v916 = vpop.f32.mrb[0].mxu0
        %917 = vmatprep.mubr.bf16.mxu0 0
        %918 = vmatmul.mubr.bf16.gmra.mrb[0].mxu0 %v352
        %v919 = vpop.f32.mrb[0].mxu0
        %v920 = vadd.f32 %v337, %v919
        %v921 = vpop.f32.mrb[0].mxu0
        %v922 = vpop.f32.mrb[0].mxu0
        %v923 = vpop.f32.mrb[0].mxu0
        %924 = vdwg.mxu0
        %vm925 = vcmp.gt.f32.partialorder %v912, 0.0
        %vm926 = vcmp.gt.f32.partialorder %v915, 0.0
        %vm927 = vcmp.gt.f32.partialorder %v920, 0.0
        %v928 = vmul.f32 %v912, 0.01
        %v929 = vmul.f32 %v915, 0.01
        %v930 = vmul.f32 %v920, 0.01
        %v931 = vsel %vm925, %v912, %v928
        %v932 = vsel %vm926, %v915, %v929
        %v933 = vsel %vm927, %v920, %v930
        %v934 = vpack.c.bf16 %v932, %v931
        %v935 = vpack.c.bf16 %v933, %v933
        %v937 = vsel %vm261, %v935, 0
        %939 = vmatprep.subr.bf16.mxu0 0
        %940 = vmatpush1.bf16.msra.mxu0 %v934
        %941 = vmatprep.subr.bf16.mxu0 0
        %942 = vmatpush1.bf16.msra.mxu0 %v937
        %943 = vmatprep.subr.bf16.mxu0 0
        %944 = vmatpush1.bf16.msra.mxu0 0
        %945 = vmatprep.subr.bf16.mxu0 0
        %946 = vmatpush1.bf16.msra.mxu0 0
        %947 = vmatprep.subr.bf16.mxu0 0
        %948 = vmatpush1.bf16.msra.mxu0 0
        %949 = vmatprep.subr.bf16.mxu0 0
        %950 = vmatpush1.bf16.msra.mxu0 0
        %951 = vmatprep.subr.bf16.mxu0 0
        %952 = vmatpush1.bf16.msra.mxu0 0
        %953 = vmatprep.subr.bf16.mxu0 0
        %954 = vmatpush1.bf16.msra.mxu0 0
        %955 = vmatprep.subr.bf16.mxu0 0
        %956 = vmatpush1.bf16.msra.mxu0 0
        %957 = vmatprep.subr.bf16.mxu0 0
        %958 = vmatpush1.bf16.msra.mxu0 0
        %959 = vmatprep.subr.bf16.mxu0 0
        %960 = vmatpush1.bf16.msra.mxu0 0
        %961 = vmatprep.subr.bf16.mxu0 0
        %962 = vmatpush1.bf16.msra.mxu0 0
        %963 = vmatprep.subr.bf16.mxu0 0
        %964 = vmatpush1.bf16.msra.mxu0 0
        %965 = vmatprep.subr.bf16.mxu0 0
        %966 = vmatpush1.bf16.msra.mxu0 0
        %967 = vmatprep.subr.bf16.mxu0 0
        %968 = vmatpush1.bf16.msra.mxu0 0
        %969 = vmatprep.subr.bf16.mxu0 0
        %970 = vmatpush1.bf16.msra.mxu0 0
        %971 = vmatprep.mubr.bf16.mxu0 0
        %972 = vmatmul.mubr.bf16.gmra.mrb[0].mxu0 %v422
        %v973 = vpop.f32.mrb[0].mxu0
        %v974 = vadd.f32 %v419, %v973
        %v975 = vpop.f32.mrb[0].mxu0
        %v976 = vpop.f32.mrb[0].mxu0
        %v977 = vpop.f32.mrb[0].mxu0
        %978 = vdwg.mxu0
        %v979 = vtanh.pop %v974
        %v981 = vrot.slane %v639, 6
        %v984 = vrot.slane %v807, 4
        %v987 = vrot.slane %v979, 2
        %v989 = vsel %vm261, %v467, %v981
        %vm990 = vcmask 1043456
        %v991 = vsel %vm990, %v989, %v984
        %vm992 = vcmask 1045504
        %v993 = vsel %vm992, %v991, %v987
        %994 = vst [vmem:[%s213] sm:$0xff] %v993
        %s995 = sand.u32 %s93, 1
        %s996 = scalar_lea.sflag [#allocation4], %s995
        %s997 = sand.u32 %s93, 1
        %s998 = smul.addr %s997, 8
        %s999 = scalar_lea.vmem [#allocation3], %s998
        // Predicated region
        $region74: #{tpu_custom_call.1} parent=68 // pred_check
          %p1000 = pneg %p103
        $region75: #{tpu_custom_call.1} parent=68 // pred_check_branch
          %1002 = sbr.rel (%p1000) target = $region77
        $region76: #{tpu_custom_call.1} parent=68 // pred_region
          %s1004 = ssub.s32 128, 128
          %1005 = vsyncadd %s996, %s1004
          %s1006 = smul.addr %s17, 128
          %s1007 = scalar_lea.hbm %s3, %s1006
          %s1009 = sshll.u32 %s999, 4
          %s1010 = int_to_ptr.vmem [resolvable:$true] %s1009
          %1012 = dma.vmem_to_hbm [thread:$0]  %s1010, 128, %s1007, %s996
        $region77: #{tpu_custom_call.1} parent=68 // pred_fallthru
          _
      $region69: #{tpu_custom_call.1} parent=5 // pred_fallthru
        _
      %p1013 = scmp.le.s32.totalorder 2, %s12
      // Predicated region
      $region78: #{tpu_custom_call.1} parent=5 // pred_check
        %p1014 = pneg %p1013
      $region79: #{tpu_custom_call.1} parent=5 // pred_check_branch
        %1016 = sbr.rel (%p1014) target = $region81
      $region80: #{tpu_custom_call.1} parent=5 // pred_region
        %s1017 = ssub.s32 %s12, 2
        // Predicated region
        $region82: #{tpu_custom_call.1} parent=80 // pred_check
          %p1018 = pneg %p109
        $region83: #{tpu_custom_call.1} parent=80 // pred_check_branch
          %1020 = sbr.rel (%p1018) target = $region85
        $region84: #{tpu_custom_call.1} parent=80 // pred_region
          %s1021 = sand.u32 %s94, 1
          %s1022 = scalar_lea.sflag [#allocation4], %s1021
          %s1023 = sand.u32 %s94, 1
          %s1024 = smul.addr %s1023, 8
          %s1025 = scalar_lea.vmem [#allocation3], %s1024
          %1026 = dma.done %s1022, 128
        $region85: #{tpu_custom_call.1} parent=80 // pred_fallthru
          _
      $region81: #{tpu_custom_call.1} parent=5 // pred_fallthru
        _
    $region6: #{tpu_custom_call.1} parent=1 // loop_footer
      %s16 = sadd.s32 1, %s12
    $region7: #{tpu_custom_call.1} parent=1 // loop_footer_branch
      %11 = sbr.rel target = $region3
    $region8: #{tpu_custom_call.1} parent=1 // loop_exit
      _
    %1027 = vsyncpa [#allocation4], 1
    %s1028 = scalar_lea.sflag [#allocation4], 1
    %1029 = vsyncpa %s1028, 1

</llo_original>
